<compile_context>
chip_gen: v7x
topology: tpu7x:2x2x1
jax: 0.10.0
libtpu: 0.0.40
codegen_flags: <defaults>
</compile_context>

<pallas_src>
import jax
import jax.numpy as jnp
import numpy as np
from jax import lax
from jax.experimental import pallas as pl
from jax.experimental.pallas import tpu as pltpu


def _round_up(x, m):
    return ((x + m - 1) // m) * m


def _make_bigru_kernel(T, B, H):
    """Build the bi-GRU kernel.  T: seq len, B: padded batch (mult of 8),
    H: padded hidden (mult of 128)."""

    def kernel(x_ref,
               wi_f_ref, wh_f_ref, bi_f_ref, bhn_f_ref,
               wi_b_ref, wh_b_ref, bi_b_ref, bhn_b_ref,
               out_ref,
               gif_ref, gib_ref):
        # ---- hoisted input projections: one well-filled MXU matmul per direction.
        # bi_*_ref already contains b_i + [b_hr | b_hz | 0].
        x = x_ref[...]
        gif_ref[...] = (jnp.dot(x, wi_f_ref[...], preferred_element_type=jnp.float32)
                        + bi_f_ref[...])
        gib_ref[...] = (jnp.dot(x, wi_b_ref[...], preferred_element_type=jnp.float32)
                        + bi_b_ref[...])

        wh_f = wh_f_ref[...]
        wh_b = wh_b_ref[...]
        bhn_f = bhn_f_ref[...]
        bhn_b = bhn_b_ref[...]

        def cell(gi, h, wh, bhn):
            # single fused (B, H) x (H, 3H) matmul for all three gates
            gh = jnp.dot(h, wh, preferred_element_type=jnp.float32)
            rz = jax.nn.sigmoid(gi[:, : 2 * H] + gh[:, : 2 * H])  # one wide EUP push
            r = rz[:, :H]
            z = rz[:, H:]
            n = jnp.tanh(gi[:, 2 * H:] + r * (gh[:, 2 * H:] + bhn))
            return (1.0 - z) * n + z * h

        def body(t, carry):
            h_f, h_b = carry
            off_f = pl.multiple_of(t * B, B)
            off_b = pl.multiple_of((T - 1 - t) * B, B)
            # forward / backward cells interleaved in one body for ILP
            h_f = cell(gif_ref[pl.ds(off_f, B), :], h_f, wh_f, bhn_f)
            h_b = cell(gib_ref[pl.ds(off_b, B), :], h_b, wh_b, bhn_b)
            out_ref[pl.ds(off_f, B), pl.ds(0, H)] = h_f
            out_ref[pl.ds(off_b, B), pl.ds(H, H)] = h_b
            return h_f, h_b

        h0 = jnp.zeros((B, H), jnp.float32)
        lax.fori_loop(0, T, body, (h0, h0))

    return kernel


def _fuse_dir_weights(wi, wh, bi, bh, H, Hp):
    """(3,H,H)/(3,1,H) PyTorch gate-ordered [r,z,n] params -> fused lane-padded layout."""
    wi_p = jnp.zeros((Hp, 3 * Hp), jnp.float32)
    wh_p = jnp.zeros((Hp, 3 * Hp), jnp.float32)
    for g in range(3):
        wi_p = wi_p.at[:H, g * Hp:g * Hp + H].set(wi[g])
        wh_p = wh_p.at[:H, g * Hp:g * Hp + H].set(wh[g])
    # b_i plus the r/z hidden biases are folded into the hoisted projection;
    # b_hn must stay inside r*(.) and is applied per step.
    bi_p = jnp.zeros((1, 3 * Hp), jnp.float32)
    bi_p = bi_p.at[:, 0 * Hp:0 * Hp + H].set(bi[0] + bh[0])
    bi_p = bi_p.at[:, 1 * Hp:1 * Hp + H].set(bi[1] + bh[1])
    bi_p = bi_p.at[:, 2 * Hp:2 * Hp + H].set(bi[2])
    bhn_p = jnp.zeros((1, Hp), jnp.float32).at[:, :H].set(bh[2])
    return wi_p, wh_p, bi_p, bhn_p


def bigru_pallas(embs, params):
    T, B, H = embs.shape
    Hp = _round_up(max(H, 128), 128)   # lane width
    Bp = _round_up(max(B, 8), 8)       # sublane width

    # Zero padding is GRU-stable (h0 = 0, padded weight rows/cols and biases are 0),
    # so padded lanes/rows never pollute valid ones; padding is sliced off below.
    x = jnp.zeros((T, Bp, Hp), jnp.float32).at[:, :B, :H].set(embs)
    x2d = x.reshape(T * Bp, Hp)

    wi_f, wh_f, bi_f, bhn_f = _fuse_dir_weights(params["wi_f"], params["wh_f"],
                                                params["bi_f"], params["bh_f"], H, Hp)
    wi_b, wh_b, bi_b, bhn_b = _fuse_dir_weights(params["wi_b"], params["wh_b"],
                                                params["bi_b"], params["bh_b"], H, Hp)

    vmem = pl.BlockSpec(memory_space=pltpu.MemorySpace.VMEM)
    out2d = pl.pallas_call(
        _make_bigru_kernel(T, Bp, Hp),
        out_shape=jax.ShapeDtypeStruct((T * Bp, 2 * Hp), jnp.float32),
        in_specs=[vmem] * 9,
        out_specs=vmem,
        scratch_shapes=[pltpu.VMEM((T * Bp, 3 * Hp), jnp.float32),
                        pltpu.VMEM((T * Bp, 3 * Hp), jnp.float32)],
    )(x2d, wi_f, wh_f, bi_f, bhn_f, wi_b, wh_b, bi_b, bhn_b)

    out = out2d.reshape(T, Bp, 2 * Hp)
    if H == Hp:
        # fwd|bwd halves are already contiguous and lane-dense: no extra concat pass.
        return out[:, :B, : 2 * H]
    return jnp.concatenate([out[:, :B, :H], out[:, :B, Hp:Hp + H]], axis=-1)


def encoder_forward(params, tokens):
    """Mirror of Encoder.forward: returns (outputs, final_hidden = outputs[-1])."""
    embs = params["embedding"][tokens].astype(jnp.float32)   # (T, B, H) gather (glue)
    # TODO(synk): nn.Dropout(p=0.5) is implemented as identity (eval mode);
    # training-mode stochastic dropout would need pltpu.prng_seed/prng_random_bits.
    outputs = bigru_pallas(embs, params)                      # (T, B, 2H)
    final_hidden = outputs[-1]                                # (B, 2H)
    return outputs, final_hidden


# ---------------- pure-JAX reference (for correctness check) ----------------
def _gru_ref(embs, params):
    def run_dir(xs, wi, wh, bi, bh):
        B, H = xs.shape[1], xs.shape[2]

        def step(h, x_t):
            r = jax.nn.sigmoid(x_t @ wi[0] + bi[0] + h @ wh[0] + bh[0])
            z = jax.nn.sigmoid(x_t @ wi[1] + bi[1] + h @ wh[1] + bh[1])
            n = jnp.tanh(x_t @ wi[2] + bi[2] + r * (h @ wh[2] + bh[2]))
            h_new = (1.0 - z) * n + z * h
            return h_new, h_new

        h0 = jnp.zeros((B, H), jnp.float32)
        _, ys = lax.scan(step, h0, xs)
        return ys

    out_f = run_dir(embs, params["wi_f"], params["wh_f"], params["bi_f"], params["bh_f"])
    out_b = run_dir(embs[::-1], params["wi_b"], params["wh_b"],
                    params["bi_b"], params["bh_b"])[::-1]
    return jnp.concatenate([out_f, out_b], axis=-1)


if __name__ == "__main__":
    voc_size, hdim, padding_idx = 50, 32, 0
    T, B = 8, 2   # seq_len, batch (PyTorch GRU default is seq-first)

    key = jax.random.PRNGKey(0)
    k_emb, k_w, k_tok = jax.random.split(key, 3)

    emb_w = jax.random.normal(k_emb, (voc_size, hdim), jnp.float32)
    emb_w = emb_w.at[padding_idx].set(0.0)          # padding_idx row is zero

    kscale = 1.0 / np.sqrt(hdim)
    wkeys = jax.random.split(k_w, 8)

    def u(k, shape):
        return jax.random.uniform(k, shape, jnp.float32, -kscale, kscale)

    params = dict(
        embedding=emb_w,
        wi_f=u(wkeys[0], (3, hdim, hdim)), wh_f=u(wkeys[1], (3, hdim, hdim)),
        bi_f=u(wkeys[2], (3, 1, hdim)),    bh_f=u(wkeys[3], (3, 1, hdim)),
        wi_b=u(wkeys[4], (3, hdim, hdim)), wh_b=u(wkeys[5], (3, hdim, hdim)),
        bi_b=u(wkeys[6], (3, 1, hdim)),    bh_b=u(wkeys[7], (3, 1, hdim)),
    )

    tokens = jax.random.randint(k_tok, (T, B), 0, voc_size, dtype=jnp.int32)

    outputs, final_hidden = jax.jit(encoder_forward)(params, tokens)
    jax.block_until_ready((outputs, final_hidden))

    assert outputs.shape == (T, B, 2 * hdim)
    assert final_hidden.shape == (B, 2 * hdim)

    # sanity check against pure-JAX reference
    embs = params["embedding"][tokens].astype(jnp.float32)
    ref = _gru_ref(embs, params)
    np.testing.assert_allclose(np.asarray(outputs), np.asarray(ref), rtol=1e-2, atol=1e-2)
    np.testing.assert_allclose(np.asarray(final_hidden), np.asarray(ref[-1]),
                               rtol=1e-2, atol=1e-2)

    print("KERNEL_OK")
</pallas_src>

<mosaic_0001>
module attributes {stable_mosaic.version = 11 : i64} {
  func.func @kernel(%arg0: memref<64x128xf32, #tpu.memory_space<vmem>>, %arg1: memref<128x384xf32, #tpu.memory_space<vmem>>, %arg2: memref<128x384xf32, #tpu.memory_space<vmem>>, %arg3: memref<1x384xf32, #tpu.memory_space<vmem>>, %arg4: memref<1x128xf32, #tpu.memory_space<vmem>>, %arg5: memref<128x384xf32, #tpu.memory_space<vmem>>, %arg6: memref<128x384xf32, #tpu.memory_space<vmem>>, %arg7: memref<1x384xf32, #tpu.memory_space<vmem>>, %arg8: memref<1x128xf32, #tpu.memory_space<vmem>>, %arg9: memref<64x256xf32, #tpu.memory_space<vmem>>, %arg10: memref<64x384xf32, #tpu.memory_space<vmem>>, %arg11: memref<64x384xf32, #tpu.memory_space<vmem>>) attributes {dimension_semantics = [], scalar_prefetch = 0 : i64, scratch_operands = 2 : i64, tpu.core_type = #tpu.core_type<tc>} {
    %c0 = arith.constant 0 : index
    %c0_0 = arith.constant 0 : index
    %0 = vector.load %arg0[%c0, %c0_0] : memref<64x128xf32, #tpu.memory_space<vmem>>, vector<64x128xf32>
    %c0_1 = arith.constant 0 : index
    %c0_2 = arith.constant 0 : index
    %1 = vector.load %arg1[%c0_1, %c0_2] : memref<128x384xf32, #tpu.memory_space<vmem>>, vector<128x384xf32>
    %cst = arith.constant dense<0.000000e+00> : vector<64x384xf32>
    %2 = tpu.matmul %0, %1, %cst {dimension_numbers = #tpu.dot_dimension_numbers<[1], [0], [0], [1], [0, 0, 1, 1], [], []>} : vector<64x128xf32>, vector<128x384xf32>, vector<64x384xf32> -> vector<64x384xf32>
    %c0_3 = arith.constant 0 : index
    %c0_4 = arith.constant 0 : index
    %3 = vector.load %arg3[%c0_3, %c0_4] : memref<1x384xf32, #tpu.memory_space<vmem>>, vector<1x384xf32>
    %4 = vector.broadcast %3 : vector<1x384xf32> to vector<64x384xf32>
    %5 = arith.addf %2, %4 : vector<64x384xf32>
    %c0_5 = arith.constant 0 : index
    %c0_6 = arith.constant 0 : index
    %6 = vector.load %arg10[%c0_5, %c0_6] : memref<64x384xf32, #tpu.memory_space<vmem>>, vector<64x384xf32>
    tpu.vector_store %arg10[%c0_5, %c0_6], %5 {strides = array<i32>} : memref<64x384xf32, #tpu.memory_space<vmem>>, vector<64x384xf32>,
    %c0_7 = arith.constant 0 : index
    %c0_8 = arith.constant 0 : index
    %7 = vector.load %arg5[%c0_7, %c0_8] : memref<128x384xf32, #tpu.memory_space<vmem>>, vector<128x384xf32>
    %cst_9 = arith.constant dense<0.000000e+00> : vector<64x384xf32>
    %8 = tpu.matmul %0, %7, %cst_9 {dimension_numbers = #tpu.dot_dimension_numbers<[1], [0], [0], [1], [0, 0, 1, 1], [], []>} : vector<64x128xf32>, vector<128x384xf32>, vector<64x384xf32> -> vector<64x384xf32>
    %c0_10 = arith.constant 0 : index
    %c0_11 = arith.constant 0 : index
    %9 = vector.load %arg7[%c0_10, %c0_11] : memref<1x384xf32, #tpu.memory_space<vmem>>, vector<1x384xf32>
    %10 = vector.broadcast %9 : vector<1x384xf32> to vector<64x384xf32>
    %11 = arith.addf %8, %10 : vector<64x384xf32>
    %c0_12 = arith.constant 0 : index
    %c0_13 = arith.constant 0 : index
    %12 = vector.load %arg11[%c0_12, %c0_13] : memref<64x384xf32, #tpu.memory_space<vmem>>, vector<64x384xf32>
    tpu.vector_store %arg11[%c0_12, %c0_13], %11 {strides = array<i32>} : memref<64x384xf32, #tpu.memory_space<vmem>>, vector<64x384xf32>,
    %c0_14 = arith.constant 0 : index
    %c0_15 = arith.constant 0 : index
    %13 = vector.load %arg2[%c0_14, %c0_15] : memref<128x384xf32, #tpu.memory_space<vmem>>, vector<128x384xf32>
    %c0_16 = arith.constant 0 : index
    %c0_17 = arith.constant 0 : index
    %14 = vector.load %arg6[%c0_16, %c0_17] : memref<128x384xf32, #tpu.memory_space<vmem>>, vector<128x384xf32>
    %c0_18 = arith.constant 0 : index
    %c0_19 = arith.constant 0 : index
    %15 = vector.load %arg4[%c0_18, %c0_19] : memref<1x128xf32, #tpu.memory_space<vmem>>, vector<1x128xf32>
    %c0_20 = arith.constant 0 : index
    %c0_21 = arith.constant 0 : index
    %16 = vector.load %arg8[%c0_20, %c0_21] : memref<1x128xf32, #tpu.memory_space<vmem>>, vector<1x128xf32>
    %cst_22 = arith.constant 0.000000e+00 : f32
    %17 = vector.broadcast %cst_22 : f32 to vector<8x128xf32>
    %c0_i32 = arith.constant 0 : i32
    %c8_i32 = arith.constant 8 : i32
    %18 = arith.addi %c0_i32, %c8_i32 : i32
    %c1_i32 = arith.constant 1 : i32
    %19:2 = scf.for %arg12 = %c0_i32 to %18 step %c1_i32 iter_args(%arg13 = %17, %arg14 = %17) -> (vector<8x128xf32>, vector<8x128xf32>)  : i32 {
      %c8_i32_24 = arith.constant 8 : i32
      %20 = arith.muli %arg12, %c8_i32_24 : i32
      %21 = tpu.assume_multiple %20, 8 : i32
      %c7_i32 = arith.constant 7 : i32
      %22 = arith.subi %c7_i32, %arg12 : i32
      %c8_i32_25 = arith.constant 8 : i32
      %23 = arith.muli %22, %c8_i32_25 : i32
      %24 = tpu.assume_multiple %23, 8 : i32
      %25 = arith.index_cast %21 : i32 to index
      %c0_26 = arith.constant 0 : index
      %26 = vector.load %arg10[%25, %c0_26] : memref<64x384xf32, #tpu.memory_space<vmem>>, vector<8x384xf32>
      %cst_27 = arith.constant dense<0.000000e+00> : vector<8x384xf32>
      %27 = tpu.matmul %arg13, %13, %cst_27 {dimension_numbers = #tpu.dot_dimension_numbers<[1], [0], [0], [1], [0, 0, 1, 1], [], []>} : vector<8x128xf32>, vector<128x384xf32>, vector<8x384xf32> -> vector<8x384xf32>
      %28 = vector.extract_strided_slice %26 {offsets = [0, 0], sizes = [8, 256], strides = [1, 1]} : vector<8x384xf32> to vector<8x256xf32>
      %29 = vector.extract_strided_slice %27 {offsets = [0, 0], sizes = [8, 256], strides = [1, 1]} : vector<8x384xf32> to vector<8x256xf32>
      %30 = arith.addf %28, %29 : vector<8x256xf32>
      %31 = arith.negf %30 : vector<8x256xf32>
      %32 = math.exp %31 : vector<8x256xf32>
      %cst_28 = arith.constant 1.000000e+00 : f32
      %33 = vector.broadcast %cst_28 : f32 to vector<8x256xf32>
      %34 = arith.addf %33, %32 : vector<8x256xf32>
      %35 = arith.divf %33, %34 : vector<8x256xf32>
      %36 = vector.extract_strided_slice %35 {offsets = [0, 0], sizes = [8, 128], strides = [1, 1]} : vector<8x256xf32> to vector<8x128xf32>
      %37 = vector.extract_strided_slice %35 {offsets = [0, 128], sizes = [8, 128], strides = [1, 1]} : vector<8x256xf32> to vector<8x128xf32>
      %38 = vector.extract_strided_slice %26 {offsets = [0, 256], sizes = [8, 128], strides = [1, 1]} : vector<8x384xf32> to vector<8x128xf32>
      %39 = vector.extract_strided_slice %27 {offsets = [0, 256], sizes = [8, 128], strides = [1, 1]} : vector<8x384xf32> to vector<8x128xf32>
      %40 = vector.broadcast %15 : vector<1x128xf32> to vector<8x128xf32>
      %41 = arith.addf %39, %40 : vector<8x128xf32>
      %42 = arith.mulf %36, %41 : vector<8x128xf32>
      %43 = arith.addf %38, %42 : vector<8x128xf32>
      %44 = math.tanh %43 : vector<8x128xf32>
      %cst_29 = arith.constant 1.000000e+00 : f32
      %45 = vector.broadcast %cst_29 : f32 to vector<8x128xf32>
      %46 = arith.subf %45, %37 : vector<8x128xf32>
      %47 = arith.mulf %46, %44 : vector<8x128xf32>
      %48 = arith.mulf %37, %arg13 : vector<8x128xf32>
      %49 = arith.addf %47, %48 : vector<8x128xf32>
      %50 = arith.index_cast %24 : i32 to index
      %c0_30 = arith.constant 0 : index
      %51 = vector.load %arg11[%50, %c0_30] : memref<64x384xf32, #tpu.memory_space<vmem>>, vector<8x384xf32>
      %cst_31 = arith.constant dense<0.000000e+00> : vector<8x384xf32>
      %52 = tpu.matmul %arg14, %14, %cst_31 {dimension_numbers = #tpu.dot_dimension_numbers<[1], [0], [0], [1], [0, 0, 1, 1], [], []>} : vector<8x128xf32>, vector<128x384xf32>, vector<8x384xf32> -> vector<8x384xf32>
      %53 = vector.extract_strided_slice %51 {offsets = [0, 0], sizes = [8, 256], strides = [1, 1]} : vector<8x384xf32> to vector<8x256xf32>
      %54 = vector.extract_strided_slice %52 {offsets = [0, 0], sizes = [8, 256], strides = [1, 1]} : vector<8x384xf32> to vector<8x256xf32>
      %55 = arith.addf %53, %54 : vector<8x256xf32>
      %56 = arith.negf %55 : vector<8x256xf32>
      %57 = math.exp %56 : vector<8x256xf32>
      %cst_32 = arith.constant 1.000000e+00 : f32
      %58 = vector.broadcast %cst_32 : f32 to vector<8x256xf32>
      %59 = arith.addf %58, %57 : vector<8x256xf32>
      %60 = arith.divf %58, %59 : vector<8x256xf32>
      %61 = vector.extract_strided_slice %60 {offsets = [0, 0], sizes = [8, 128], strides = [1, 1]} : vector<8x256xf32> to vector<8x128xf32>
      %62 = vector.extract_strided_slice %60 {offsets = [0, 128], sizes = [8, 128], strides = [1, 1]} : vector<8x256xf32> to vector<8x128xf32>
      %63 = vector.extract_strided_slice %51 {offsets = [0, 256], sizes = [8, 128], strides = [1, 1]} : vector<8x384xf32> to vector<8x128xf32>
      %64 = vector.extract_strided_slice %52 {offsets = [0, 256], sizes = [8, 128], strides = [1, 1]} : vector<8x384xf32> to vector<8x128xf32>
      %65 = vector.broadcast %16 : vector<1x128xf32> to vector<8x128xf32>
      %66 = arith.addf %64, %65 : vector<8x128xf32>
      %67 = arith.mulf %61, %66 : vector<8x128xf32>
      %68 = arith.addf %63, %67 : vector<8x128xf32>
      %69 = math.tanh %68 : vector<8x128xf32>
      %cst_33 = arith.constant 1.000000e+00 : f32
      %70 = vector.broadcast %cst_33 : f32 to vector<8x128xf32>
      %71 = arith.subf %70, %62 : vector<8x128xf32>
      %72 = arith.mulf %71, %69 : vector<8x128xf32>
      %73 = arith.mulf %62, %arg14 : vector<8x128xf32>
      %74 = arith.addf %72, %73 : vector<8x128xf32>
      %75 = arith.index_cast %21 : i32 to index
      %c0_34 = arith.constant 0 : index
      %76 = vector.load %arg9[%75, %c0_34] : memref<64x256xf32, #tpu.memory_space<vmem>>, vector<8x128xf32>
      tpu.vector_store %arg9[%75, %c0_34], %49 {strides = array<i32>} : memref<64x256xf32, #tpu.memory_space<vmem>>, vector<8x128xf32>,
      %77 = arith.index_cast %24 : i32 to index
      %c128 = arith.constant 128 : index
      %78 = vector.load %arg9[%77, %c128] : memref<64x256xf32, #tpu.memory_space<vmem>>, vector<8x128xf32>
      tpu.vector_store %arg9[%77, %c128], %74 {strides = array<i32>} : memref<64x256xf32, #tpu.memory_space<vmem>>, vector<8x128xf32>,
      scf.yield %49, %74 : vector<8x128xf32>, vector<8x128xf32>
    }
    %c8_i32_23 = arith.constant 8 : i32
    return
  }
}

</mosaic_0001>

<llo_original>
// kernel: encoder_forward.1
$region0: #{encoder_forward.1}
  #allocation0 [shape = 'u32[]', space=smem, size = 0x4, offset = 0x4, fixed_abs, tag = 'smem constant byte address 0x4 - core index']
  #allocation1 [shape = 'u32[144,128]{1,0:T(1,128)}', space=vmem, size = 0x12000, scoped, tag = 'internal scratch']
  #allocation2 [shape = 'f32[64,384]{1,0:T(8,128)}', space=vmem, size = 0x18000, scoped, tag = 'scratch operand']
  #allocation3 [shape = 'f32[64,384]{1,0:T(8,128)}', space=vmem, size = 0x18000, scoped, tag = 'scratch operand']
  %s0 = inlined_call_operand.vmem [shape: f32[64,128], index: 0, kind: input, shape index: {}]
  %s1 = inlined_call_operand.vmem [shape: f32[128,384], index: 1, kind: input, shape index: {}]
  %s2 = inlined_call_operand.vmem [shape: f32[128,384], index: 2, kind: input, shape index: {}]
  %s3 = inlined_call_operand.vmem [shape: f32[1,384], index: 3, kind: input, shape index: {}]
  %s4 = inlined_call_operand.vmem [shape: f32[1,128], index: 4, kind: input, shape index: {}]
  %s5 = inlined_call_operand.vmem [shape: f32[128,384], index: 5, kind: input, shape index: {}]
  %s6 = inlined_call_operand.vmem [shape: f32[128,384], index: 6, kind: input, shape index: {}]
  %s7 = inlined_call_operand.vmem [shape: f32[1,384], index: 7, kind: input, shape index: {}]
  %s8 = inlined_call_operand.vmem [shape: f32[1,128], index: 8, kind: input, shape index: {}]
  %s9 = inlined_call_operand.vmem [shape: f32[64,256], index: 9, kind: output, shape index: {}]
  %s10 = sld [smem:[#allocation0]]
  $region53: #{encoder_forward.1} parent=0
    _
  %s12 = ssub.s32 1, %s10
  %s13 = scalar_select 0, %s12, %s10
  // Predicated region
  $region2: #{encoder_forward.1} parent=0 // pred_check
    _
  $region3: #{encoder_forward.1} parent=0 // pred_check_branch
    %15 = sbr.rel (0) target = $region5
  $region4: #{encoder_forward.1} parent=0 // pred_region
    _
  $region5: #{encoder_forward.1} parent=0 // pred_fallthru
    _
  // Predicated region
  $region6: #{encoder_forward.1} parent=0 // pred_check
    _
  $region7: #{encoder_forward.1} parent=0 // pred_check_branch
    %17 = sbr.rel (0) target = $region9
  $region8: #{encoder_forward.1} parent=0 // pred_region
    _
  $region9: #{encoder_forward.1} parent=0 // pred_fallthru
    _
  // Predicated region
  $region10: #{encoder_forward.1} parent=0 // pred_check
    _
  $region11: #{encoder_forward.1} parent=0 // pred_check_branch
    %19 = sbr.rel (0) target = $region13
  $region12: #{encoder_forward.1} parent=0 // pred_region
    _
  $region13: #{encoder_forward.1} parent=0 // pred_fallthru
    _
  // Predicated region
  $region14: #{encoder_forward.1} parent=0 // pred_check
    _
  $region15: #{encoder_forward.1} parent=0 // pred_check_branch
    %21 = sbr.rel (0) target = $region17
  $region16: #{encoder_forward.1} parent=0 // pred_region
    _
  $region17: #{encoder_forward.1} parent=0 // pred_fallthru
    _
  // Predicated region
  $region18: #{encoder_forward.1} parent=0 // pred_check
    _
  $region19: #{encoder_forward.1} parent=0 // pred_check_branch
    %23 = sbr.rel (0) target = $region21
  $region20: #{encoder_forward.1} parent=0 // pred_region
    _
  $region21: #{encoder_forward.1} parent=0 // pred_fallthru
    _
  // Predicated region
  $region22: #{encoder_forward.1} parent=0 // pred_check
    _
  $region23: #{encoder_forward.1} parent=0 // pred_check_branch
    %25 = sbr.rel (0) target = $region25
  $region24: #{encoder_forward.1} parent=0 // pred_region
    _
  $region25: #{encoder_forward.1} parent=0 // pred_fallthru
    _
  // Predicated region
  $region26: #{encoder_forward.1} parent=0 // pred_check
    _
  $region27: #{encoder_forward.1} parent=0 // pred_check_branch
    %27 = sbr.rel (0) target = $region29
  $region28: #{encoder_forward.1} parent=0 // pred_region
    _
  $region29: #{encoder_forward.1} parent=0 // pred_fallthru
    _
  // Predicated region
  $region30: #{encoder_forward.1} parent=0 // pred_check
    _
  $region31: #{encoder_forward.1} parent=0 // pred_check_branch
    %29 = sbr.rel (0) target = $region33
  $region32: #{encoder_forward.1} parent=0 // pred_region
    _
  $region33: #{encoder_forward.1} parent=0 // pred_fallthru
    _
  // Predicated region
  $region34: #{encoder_forward.1} parent=0 // pred_check
    _
  $region35: #{encoder_forward.1} parent=0 // pred_check_branch
    %31 = sbr.rel (0) target = $region37
  $region36: #{encoder_forward.1} parent=0 // pred_region
    _
  $region37: #{encoder_forward.1} parent=0 // pred_fallthru
    _
  %v32 = vld [vmem:[%s0] sm:$0xff]
  %v33 = vld [vmem:[%s0 + $0x8] sm:$0xff]
  %v34 = vld [vmem:[%s0 + $0x10] sm:$0xff]
  %v35 = vld [vmem:[%s0 + $0x18] sm:$0xff]
  %v36 = vld [vmem:[%s0 + $0x20] sm:$0xff]
  %v37 = vld [vmem:[%s0 + $0x28] sm:$0xff]
  %v38 = vld [vmem:[%s0 + $0x30] sm:$0xff]
  %v39 = vld [vmem:[%s0 + $0x38] sm:$0xff]
  %v40 = vld [vmem:[%s1] sm:$0xff]
  %v41 = vld [vmem:[%s1 + $0x8] sm:$0xff]
  %v42 = vld [vmem:[%s1 + $0x10] sm:$0xff]
  %v43 = vld [vmem:[%s1 + $0x18] sm:$0xff]
  %v44 = vld [vmem:[%s1 + $0x20] sm:$0xff]
  %v45 = vld [vmem:[%s1 + $0x28] sm:$0xff]
  %v46 = vld [vmem:[%s1 + $0x30] sm:$0xff]
  %v47 = vld [vmem:[%s1 + $0x38] sm:$0xff]
  %v48 = vld [vmem:[%s1 + $0x40] sm:$0xff]
  %v49 = vld [vmem:[%s1 + $0x48] sm:$0xff]
  %v50 = vld [vmem:[%s1 + $0x50] sm:$0xff]
  %v51 = vld [vmem:[%s1 + $0x58] sm:$0xff]
  %v52 = vld [vmem:[%s1 + $0x60] sm:$0xff]
  %v53 = vld [vmem:[%s1 + $0x68] sm:$0xff]
  %v54 = vld [vmem:[%s1 + $0x70] sm:$0xff]
  %v55 = vld [vmem:[%s1 + $0x78] sm:$0xff]
  %v56 = vld [vmem:[%s1 + $0x80] sm:$0xff]
  %v57 = vld [vmem:[%s1 + $0x88] sm:$0xff]
  %v58 = vld [vmem:[%s1 + $0x90] sm:$0xff]
  %v59 = vld [vmem:[%s1 + $0x98] sm:$0xff]
  %v60 = vld [vmem:[%s1 + $0xa0] sm:$0xff]
  %v61 = vld [vmem:[%s1 + $0xa8] sm:$0xff]
  %v62 = vld [vmem:[%s1 + $0xb0] sm:$0xff]
  %v63 = vld [vmem:[%s1 + $0xb8] sm:$0xff]
  %v64 = vld [vmem:[%s1 + $0xc0] sm:$0xff]
  %v65 = vld [vmem:[%s1 + $0xc8] sm:$0xff]
  %v66 = vld [vmem:[%s1 + $0xd0] sm:$0xff]
  %v67 = vld [vmem:[%s1 + $0xd8] sm:$0xff]
  %v68 = vld [vmem:[%s1 + $0xe0] sm:$0xff]
  %v69 = vld [vmem:[%s1 + $0xe8] sm:$0xff]
  %v70 = vld [vmem:[%s1 + $0xf0] sm:$0xff]
  %v71 = vld [vmem:[%s1 + $0xf8] sm:$0xff]
  %v72 = vld [vmem:[%s1 + $0x100] sm:$0xff]
  %v73 = vld [vmem:[%s1 + $0x108] sm:$0xff]
  %v74 = vld [vmem:[%s1 + $0x110] sm:$0xff]
  %v75 = vld [vmem:[%s1 + $0x118] sm:$0xff]
  %v76 = vld [vmem:[%s1 + $0x120] sm:$0xff]
  %v77 = vld [vmem:[%s1 + $0x128] sm:$0xff]
  %v78 = vld [vmem:[%s1 + $0x130] sm:$0xff]
  %v79 = vld [vmem:[%s1 + $0x138] sm:$0xff]
  %v80 = vld [vmem:[%s1 + $0x140] sm:$0xff]
  %v81 = vld [vmem:[%s1 + $0x148] sm:$0xff]
  %v82 = vld [vmem:[%s1 + $0x150] sm:$0xff]
  %v83 = vld [vmem:[%s1 + $0x158] sm:$0xff]
  %v84 = vld [vmem:[%s1 + $0x160] sm:$0xff]
  %v85 = vld [vmem:[%s1 + $0x168] sm:$0xff]
  %v86 = vld [vmem:[%s1 + $0x170] sm:$0xff]
  %v87 = vld [vmem:[%s1 + $0x178] sm:$0xff]
  %v88 = vld [vmem:[%s3] sm:$0x7]
  %v90 = vlaneseq
  %v91 = vshrl.u32 %v90, 7
  %v92 = vsub.s32 0, %v91
  %v93 = vrot.slane %v88, %v92
  %v94 = vlaneseq
  %v95 = vshrl.u32 %v94, 7
  %v96 = vsub.s32 1, %v95
  %v97 = vrot.slane %v88, %v96
  %v98 = vlaneseq
  %v99 = vshrl.u32 %v98, 7
  %v100 = vsub.s32 2, %v99
  %v101 = vrot.slane %v88, %v100
  %105 = vmatprep.subr.mxu0 %v41
  %106 = vmatpush1.msra.mxu0 %v40
  %107 = vmatprep.subr.mxu0 %v44
  %108 = vmatpush1.msra.mxu0 %v43
  %109 = vmatprep.subr.mxu0 %v47
  %110 = vmatpush1.msra.mxu0 %v46
  %111 = vmatprep.subr.mxu0 %v50
  %112 = vmatpush1.msra.mxu0 %v49
  %113 = vmatprep.subr.mxu0 %v53
  %114 = vmatpush1.msra.mxu0 %v52
  %115 = vmatprep.subr.mxu0 %v56
  %116 = vmatpush1.msra.mxu0 %v55
  %117 = vmatprep.subr.mxu0 %v59
  %118 = vmatpush1.msra.mxu0 %v58
  %119 = vmatprep.subr.mxu0 %v62
  %120 = vmatpush1.msra.mxu0 %v61
  %121 = vmatprep.subr.mxu0 %v65
  %122 = vmatpush1.msra.mxu0 %v64
  %123 = vmatprep.subr.mxu0 %v68
  %124 = vmatpush1.msra.mxu0 %v67
  %125 = vmatprep.subr.mxu0 %v71
  %126 = vmatpush1.msra.mxu0 %v70
  %127 = vmatprep.subr.mxu0 %v74
  %128 = vmatpush1.msra.mxu0 %v73
  %129 = vmatprep.subr.mxu0 %v77
  %130 = vmatpush1.msra.mxu0 %v76
  %131 = vmatprep.subr.mxu0 %v80
  %132 = vmatpush1.msra.mxu0 %v79
  %133 = vmatprep.subr.mxu0 %v83
  %134 = vmatpush1.msra.mxu0 %v82
  %135 = vmatprep.subr.mxu0 %v86
  %136 = vmatpush1.msra.mxu0 %v85
  %137 = vmatprep.subr.mxu0 0.0
  %138 = vmatpush1.msra.mxu0 0.0
  %139 = vmatprep.subr.mxu0 0.0
  %140 = vmatpush1.msra.mxu0 0.0
  %141 = vmatprep.subr.mxu0 0.0
  %142 = vmatpush1.msra.mxu0 0.0
  %143 = vmatprep.subr.mxu0 0.0
  %144 = vmatpush1.msra.mxu0 0.0
  %145 = vmatprep.subr.mxu0 0.0
  %146 = vmatpush1.msra.mxu0 0.0
  %147 = vmatprep.subr.mxu0 0.0
  %148 = vmatpush1.msra.mxu0 0.0
  %149 = vmatprep.subr.mxu0 0.0
  %150 = vmatpush1.msra.mxu0 0.0
  %151 = vmatprep.subr.mxu0 0.0
  %152 = vmatpush1.msra.mxu0 0.0
  %153 = vmatprep.subr.mxu0 0.0
  %154 = vmatpush1.msra.mxu0 0.0
  %155 = vmatprep.subr.mxu0 0.0
  %156 = vmatpush1.msra.mxu0 0.0
  %157 = vmatprep.subr.mxu0 0.0
  %158 = vmatpush1.msra.mxu0 0.0
  %159 = vmatprep.subr.mxu0 0.0
  %160 = vmatpush1.msra.mxu0 0.0
  %161 = vmatprep.subr.mxu0 0.0
  %162 = vmatpush1.msra.mxu0 0.0
  %163 = vmatprep.subr.mxu0 0.0
  %164 = vmatpush1.msra.mxu0 0.0
  %165 = vmatprep.subr.mxu0 0.0
  %166 = vmatpush1.msra.mxu0 0.0
  %167 = vmatprep.subr.mxu0 0.0
  %168 = vmatpush1.msra.mxu0 0.0
  %169 = vmatprep.mubr.f32.mxu0 0.0
  %170 = vmatmul.mubr.f32.gmra.mrb[0].mxu0 %v32
  %v171 = vpop.f32.mrb[0].mxu0
  %v172 = vadd.f32 %v93, %v171
  %v173 = vpop.f32.mrb[0].mxu0
  %v174 = vadd.f32 %v97, %v173
  %175 = vmatprep.mubr.f32.mxu0 0.0
  %176 = vmatmul.mubr.f32.gmra.mrb[0].mxu0 %v33
  %v177 = vpop.f32.mrb[0].mxu0
  %v178 = vadd.f32 %v93, %v177
  %v179 = vpop.f32.mrb[0].mxu0
  %v180 = vadd.f32 %v97, %v179
  %181 = vmatprep.mubr.f32.mxu0 0.0
  %182 = vmatmul.mubr.f32.gmra.mrb[0].mxu0 %v34
  %v183 = vpop.f32.mrb[0].mxu0
  %v184 = vadd.f32 %v93, %v183
  %v185 = vpop.f32.mrb[0].mxu0
  %v186 = vadd.f32 %v97, %v185
  %187 = vmatprep.mubr.f32.mxu0 0.0
  %188 = vmatmul.mubr.f32.gmra.mrb[0].mxu0 %v35
  %v189 = vpop.f32.mrb[0].mxu0
  %v190 = vadd.f32 %v93, %v189
  %v191 = vpop.f32.mrb[0].mxu0
  %v192 = vadd.f32 %v97, %v191
  %193 = vmatprep.mubr.f32.mxu0 0.0
  %194 = vmatmul.mubr.f32.gmra.mrb[0].mxu0 %v36
  %v195 = vpop.f32.mrb[0].mxu0
  %v196 = vadd.f32 %v93, %v195
  %v197 = vpop.f32.mrb[0].mxu0
  %v198 = vadd.f32 %v97, %v197
  %199 = vmatprep.mubr.f32.mxu0 0.0
  %200 = vmatmul.mubr.f32.gmra.mrb[0].mxu0 %v37
  %v201 = vpop.f32.mrb[0].mxu0
  %v202 = vadd.f32 %v93, %v201
  %v203 = vpop.f32.mrb[0].mxu0
  %v204 = vadd.f32 %v97, %v203
  %205 = vmatprep.mubr.f32.mxu0 0.0
  %206 = vmatmul.mubr.f32.gmra.mrb[0].mxu0 %v38
  %v207 = vpop.f32.mrb[0].mxu0
  %v208 = vadd.f32 %v93, %v207
  %v209 = vpop.f32.mrb[0].mxu0
  %v210 = vadd.f32 %v97, %v209
  %211 = vmatprep.mubr.f32.mxu0 0.0
  %212 = vmatmul.mubr.f32.gmra.mrb[0].mxu0 %v39
  %v213 = vpop.f32.mrb[0].mxu0
  %v214 = vadd.f32 %v93, %v213
  %v215 = vpop.f32.mrb[0].mxu0
  %v216 = vadd.f32 %v97, %v215
  %217 = vdwg.mxu0
  %218 = vmatprep.subr.mxu0 0.0
  %219 = vmatpush1.msra.mxu0 %v42
  %220 = vmatprep.subr.mxu0 0.0
  %221 = vmatpush1.msra.mxu0 %v45
  %222 = vmatprep.subr.mxu0 0.0
  %223 = vmatpush1.msra.mxu0 %v48
  %224 = vmatprep.subr.mxu0 0.0
  %225 = vmatpush1.msra.mxu0 %v51
  %226 = vmatprep.subr.mxu0 0.0
  %227 = vmatpush1.msra.mxu0 %v54
  %228 = vmatprep.subr.mxu0 0.0
  %229 = vmatpush1.msra.mxu0 %v57
  %230 = vmatprep.subr.mxu0 0.0
  %231 = vmatpush1.msra.mxu0 %v60
  %232 = vmatprep.subr.mxu0 0.0
  %233 = vmatpush1.msra.mxu0 %v63
  %234 = vmatprep.subr.mxu0 0.0
  %235 = vmatpush1.msra.mxu0 %v66
  %236 = vmatprep.subr.mxu0 0.0
  %237 = vmatpush1.msra.mxu0 %v69
  %238 = vmatprep.subr.mxu0 0.0
  %239 = vmatpush1.msra.mxu0 %v72
  %240 = vmatprep.subr.mxu0 0.0
  %241 = vmatpush1.msra.mxu0 %v75
  %242 = vmatprep.subr.mxu0 0.0
  %243 = vmatpush1.msra.mxu0 %v78
  %244 = vmatprep.subr.mxu0 0.0
  %245 = vmatpush1.msra.mxu0 %v81
  %246 = vmatprep.subr.mxu0 0.0
  %247 = vmatpush1.msra.mxu0 %v84
  %248 = vmatprep.subr.mxu0 0.0
  %249 = vmatpush1.msra.mxu0 %v87
  %250 = vmatprep.subr.mxu0 0.0
  %251 = vmatpush1.msra.mxu0 0.0
  %252 = vmatprep.subr.mxu0 0.0
  %253 = vmatpush1.msra.mxu0 0.0
  %254 = vmatprep.subr.mxu0 0.0
  %255 = vmatpush1.msra.mxu0 0.0
  %256 = vmatprep.subr.mxu0 0.0
  %257 = vmatpush1.msra.mxu0 0.0
  %258 = vmatprep.subr.mxu0 0.0
  %259 = vmatpush1.msra.mxu0 0.0
  %260 = vmatprep.subr.mxu0 0.0
  %261 = vmatpush1.msra.mxu0 0.0
  %262 = vmatprep.subr.mxu0 0.0
  %263 = vmatpush1.msra.mxu0 0.0
  %264 = vmatprep.subr.mxu0 0.0
  %265 = vmatpush1.msra.mxu0 0.0
  %266 = vmatprep.subr.mxu0 0.0
  %267 = vmatpush1.msra.mxu0 0.0
  %268 = vmatprep.subr.mxu0 0.0
  %269 = vmatpush1.msra.mxu0 0.0
  %270 = vmatprep.subr.mxu0 0.0
  %271 = vmatpush1.msra.mxu0 0.0
  %272 = vmatprep.subr.mxu0 0.0
  %273 = vmatpush1.msra.mxu0 0.0
  %274 = vmatprep.subr.mxu0 0.0
  %275 = vmatpush1.msra.mxu0 0.0
  %276 = vmatprep.subr.mxu0 0.0
  %277 = vmatpush1.msra.mxu0 0.0
  %278 = vmatprep.subr.mxu0 0.0
  %279 = vmatpush1.msra.mxu0 0.0
  %280 = vmatprep.subr.mxu0 0.0
  %281 = vmatpush1.msra.mxu0 0.0
  %282 = vmatprep.mubr.f32.mxu0 0.0
  %283 = vmatmul.mubr.f32.gmra.mrb[0].mxu0 %v32
  %v284 = vpop.f32.mrb[0].mxu0
  %v285 = vadd.f32 %v101, %v284
  %v286 = vpop.f32.mrb[0].mxu0
  %287 = vmatprep.mubr.f32.mxu0 0.0
  %288 = vmatmul.mubr.f32.gmra.mrb[0].mxu0 %v33
  %v289 = vpop.f32.mrb[0].mxu0
  %v290 = vadd.f32 %v101, %v289
  %v291 = vpop.f32.mrb[0].mxu0
  %292 = vmatprep.mubr.f32.mxu0 0.0
  %293 = vmatmul.mubr.f32.gmra.mrb[0].mxu0 %v34
  %v294 = vpop.f32.mrb[0].mxu0
  %v295 = vadd.f32 %v101, %v294
  %v296 = vpop.f32.mrb[0].mxu0
  %297 = vmatprep.mubr.f32.mxu0 0.0
  %298 = vmatmul.mubr.f32.gmra.mrb[0].mxu0 %v35
  %v299 = vpop.f32.mrb[0].mxu0
  %v300 = vadd.f32 %v101, %v299
  %v301 = vpop.f32.mrb[0].mxu0
  %302 = vmatprep.mubr.f32.mxu0 0.0
  %303 = vmatmul.mubr.f32.gmra.mrb[0].mxu0 %v36
  %v304 = vpop.f32.mrb[0].mxu0
  %v305 = vadd.f32 %v101, %v304
  %v306 = vpop.f32.mrb[0].mxu0
  %307 = vmatprep.mubr.f32.mxu0 0.0
  %308 = vmatmul.mubr.f32.gmra.mrb[0].mxu0 %v37
  %v309 = vpop.f32.mrb[0].mxu0
  %v310 = vadd.f32 %v101, %v309
  %v311 = vpop.f32.mrb[0].mxu0
  %312 = vmatprep.mubr.f32.mxu0 0.0
  %313 = vmatmul.mubr.f32.gmra.mrb[0].mxu0 %v38
  %v314 = vpop.f32.mrb[0].mxu0
  %v315 = vadd.f32 %v101, %v314
  %v316 = vpop.f32.mrb[0].mxu0
  %317 = vmatprep.mubr.f32.mxu0 0.0
  %318 = vmatmul.mubr.f32.gmra.mrb[0].mxu0 %v39
  %v319 = vpop.f32.mrb[0].mxu0
  %v320 = vadd.f32 %v101, %v319
  %v321 = vpop.f32.mrb[0].mxu0
  %322 = vdwg.mxu0
  %323 = vst [vmem:[#allocation2] sm:$0xff] %v172
  %324 = vst [vmem:[#allocation2 + $0x8] sm:$0xff] %v174
  %325 = vst [vmem:[#allocation2 + $0x10] sm:$0xff] %v285
  %326 = vst [vmem:[#allocation2 + $0x18] sm:$0xff] %v178
  %327 = vst [vmem:[#allocation2 + $0x20] sm:$0xff] %v180
  %328 = vst [vmem:[#allocation2 + $0x28] sm:$0xff] %v290
  %329 = vst [vmem:[#allocation2 + $0x30] sm:$0xff] %v184
  %330 = vst [vmem:[#allocation2 + $0x38] sm:$0xff] %v186
  %331 = vst [vmem:[#allocation2 + $0x40] sm:$0xff] %v295
  %332 = vst [vmem:[#allocation2 + $0x48] sm:$0xff] %v190
  %333 = vst [vmem:[#allocation2 + $0x50] sm:$0xff] %v192
  %334 = vst [vmem:[#allocation2 + $0x58] sm:$0xff] %v300
  %335 = vst [vmem:[#allocation2 + $0x60] sm:$0xff] %v196
  %336 = vst [vmem:[#allocation2 + $0x68] sm:$0xff] %v198
  %337 = vst [vmem:[#allocation2 + $0x70] sm:$0xff] %v305
  %338 = vst [vmem:[#allocation2 + $0x78] sm:$0xff] %v202
  %339 = vst [vmem:[#allocation2 + $0x80] sm:$0xff] %v204
  %340 = vst [vmem:[#allocation2 + $0x88] sm:$0xff] %v310
  %341 = vst [vmem:[#allocation2 + $0x90] sm:$0xff] %v208
  %342 = vst [vmem:[#allocation2 + $0x98] sm:$0xff] %v210
  %343 = vst [vmem:[#allocation2 + $0xa0] sm:$0xff] %v315
  %344 = vst [vmem:[#allocation2 + $0xa8] sm:$0xff] %v214
  %345 = vst [vmem:[#allocation2 + $0xb0] sm:$0xff] %v216
  %346 = vst [vmem:[#allocation2 + $0xb8] sm:$0xff] %v320
  %v347 = vld [vmem:[%s5] sm:$0xff]
  %v348 = vld [vmem:[%s5 + $0x8] sm:$0xff]
  %v349 = vld [vmem:[%s5 + $0x10] sm:$0xff]
  %v350 = vld [vmem:[%s5 + $0x18] sm:$0xff]
  %v351 = vld [vmem:[%s5 + $0x20] sm:$0xff]
  %v352 = vld [vmem:[%s5 + $0x28] sm:$0xff]
  %v353 = vld [vmem:[%s5 + $0x30] sm:$0xff]
  %v354 = vld [vmem:[%s5 + $0x38] sm:$0xff]
  %v355 = vld [vmem:[%s5 + $0x40] sm:$0xff]
  %v356 = vld [vmem:[%s5 + $0x48] sm:$0xff]
  %v357 = vld [vmem:[%s5 + $0x50] sm:$0xff]
  %v358 = vld [vmem:[%s5 + $0x58] sm:$0xff]
  %v359 = vld [vmem:[%s5 + $0x60] sm:$0xff]
  %v360 = vld [vmem:[%s5 + $0x68] sm:$0xff]
  %v361 = vld [vmem:[%s5 + $0x70] sm:$0xff]
  %v362 = vld [vmem:[%s5 + $0x78] sm:$0xff]
  %v363 = vld [vmem:[%s5 + $0x80] sm:$0xff]
  %v364 = vld [vmem:[%s5 + $0x88] sm:$0xff]
  %v365 = vld [vmem:[%s5 + $0x90] sm:$0xff]
  %v366 = vld [vmem:[%s5 + $0x98] sm:$0xff]
  %v367 = vld [vmem:[%s5 + $0xa0] sm:$0xff]
  %v368 = vld [vmem:[%s5 + $0xa8] sm:$0xff]
  %v369 = vld [vmem:[%s5 + $0xb0] sm:$0xff]
  %v370 = vld [vmem:[%s5 + $0xb8] sm:$0xff]
  %v371 = vld [vmem:[%s5 + $0xc0] sm:$0xff]
  %v372 = vld [vmem:[%s5 + $0xc8] sm:$0xff]
  %v373 = vld [vmem:[%s5 + $0xd0] sm:$0xff]
  %v374 = vld [vmem:[%s5 + $0xd8] sm:$0xff]
  %v375 = vld [vmem:[%s5 + $0xe0] sm:$0xff]
  %v376 = vld [vmem:[%s5 + $0xe8] sm:$0xff]
  %v377 = vld [vmem:[%s5 + $0xf0] sm:$0xff]
  %v378 = vld [vmem:[%s5 + $0xf8] sm:$0xff]
  %v379 = vld [vmem:[%s5 + $0x100] sm:$0xff]
  %v380 = vld [vmem:[%s5 + $0x108] sm:$0xff]
  %v381 = vld [vmem:[%s5 + $0x110] sm:$0xff]
  %v382 = vld [vmem:[%s5 + $0x118] sm:$0xff]
  %v383 = vld [vmem:[%s5 + $0x120] sm:$0xff]
  %v384 = vld [vmem:[%s5 + $0x128] sm:$0xff]
  %v385 = vld [vmem:[%s5 + $0x130] sm:$0xff]
  %v386 = vld [vmem:[%s5 + $0x138] sm:$0xff]
  %v387 = vld [vmem:[%s5 + $0x140] sm:$0xff]
  %v388 = vld [vmem:[%s5 + $0x148] sm:$0xff]
  %v389 = vld [vmem:[%s5 + $0x150] sm:$0xff]
  %v390 = vld [vmem:[%s5 + $0x158] sm:$0xff]
  %v391 = vld [vmem:[%s5 + $0x160] sm:$0xff]
  %v392 = vld [vmem:[%s5 + $0x168] sm:$0xff]
  %v393 = vld [vmem:[%s5 + $0x170] sm:$0xff]
  %v394 = vld [vmem:[%s5 + $0x178] sm:$0xff]
  %v395 = vld [vmem:[%s7] sm:$0x7]
  %v397 = vlaneseq
  %v398 = vshrl.u32 %v397, 7
  %v399 = vsub.s32 0, %v398
  %v400 = vrot.slane %v395, %v399
  %v401 = vlaneseq
  %v402 = vshrl.u32 %v401, 7
  %v403 = vsub.s32 1, %v402
  %v404 = vrot.slane %v395, %v403
  %v405 = vlaneseq
  %v406 = vshrl.u32 %v405, 7
  %v407 = vsub.s32 2, %v406
  %v408 = vrot.slane %v395, %v407
  %412 = vmatprep.subr.mxu0 %v348
  %413 = vmatpush1.msra.mxu0 %v347
  %414 = vmatprep.subr.mxu0 %v351
  %415 = vmatpush1.msra.mxu0 %v350
  %416 = vmatprep.subr.mxu0 %v354
  %417 = vmatpush1.msra.mxu0 %v353
  %418 = vmatprep.subr.mxu0 %v357
  %419 = vmatpush1.msra.mxu0 %v356
  %420 = vmatprep.subr.mxu0 %v360
  %421 = vmatpush1.msra.mxu0 %v359
  %422 = vmatprep.subr.mxu0 %v363
  %423 = vmatpush1.msra.mxu0 %v362
  %424 = vmatprep.subr.mxu0 %v366
  %425 = vmatpush1.msra.mxu0 %v365
  %426 = vmatprep.subr.mxu0 %v369
  %427 = vmatpush1.msra.mxu0 %v368
  %428 = vmatprep.subr.mxu0 %v372
  %429 = vmatpush1.msra.mxu0 %v371
  %430 = vmatprep.subr.mxu0 %v375
  %431 = vmatpush1.msra.mxu0 %v374
  %432 = vmatprep.subr.mxu0 %v378
  %433 = vmatpush1.msra.mxu0 %v377
  %434 = vmatprep.subr.mxu0 %v381
  %435 = vmatpush1.msra.mxu0 %v380
  %436 = vmatprep.subr.mxu0 %v384
  %437 = vmatpush1.msra.mxu0 %v383
  %438 = vmatprep.subr.mxu0 %v387
  %439 = vmatpush1.msra.mxu0 %v386
  %440 = vmatprep.subr.mxu0 %v390
  %441 = vmatpush1.msra.mxu0 %v389
  %442 = vmatprep.subr.mxu0 %v393
  %443 = vmatpush1.msra.mxu0 %v392
  %444 = vmatprep.subr.mxu0 0.0
  %445 = vmatpush1.msra.mxu0 0.0
  %446 = vmatprep.subr.mxu0 0.0
  %447 = vmatpush1.msra.mxu0 0.0
  %448 = vmatprep.subr.mxu0 0.0
  %449 = vmatpush1.msra.mxu0 0.0
  %450 = vmatprep.subr.mxu0 0.0
  %451 = vmatpush1.msra.mxu0 0.0
  %452 = vmatprep.subr.mxu0 0.0
  %453 = vmatpush1.msra.mxu0 0.0
  %454 = vmatprep.subr.mxu0 0.0
  %455 = vmatpush1.msra.mxu0 0.0
  %456 = vmatprep.subr.mxu0 0.0
  %457 = vmatpush1.msra.mxu0 0.0
  %458 = vmatprep.subr.mxu0 0.0
  %459 = vmatpush1.msra.mxu0 0.0
  %460 = vmatprep.subr.mxu0 0.0
  %461 = vmatpush1.msra.mxu0 0.0
  %462 = vmatprep.subr.mxu0 0.0
  %463 = vmatpush1.msra.mxu0 0.0
  %464 = vmatprep.subr.mxu0 0.0
  %465 = vmatpush1.msra.mxu0 0.0
  %466 = vmatprep.subr.mxu0 0.0
  %467 = vmatpush1.msra.mxu0 0.0
  %468 = vmatprep.subr.mxu0 0.0
  %469 = vmatpush1.msra.mxu0 0.0
  %470 = vmatprep.subr.mxu0 0.0
  %471 = vmatpush1.msra.mxu0 0.0
  %472 = vmatprep.subr.mxu0 0.0
  %473 = vmatpush1.msra.mxu0 0.0
  %474 = vmatprep.subr.mxu0 0.0
  %475 = vmatpush1.msra.mxu0 0.0
  %476 = vmatprep.mubr.f32.mxu0 0.0
  %477 = vmatmul.mubr.f32.gmra.mrb[0].mxu0 %v32
  %v478 = vpop.f32.mrb[0].mxu0
  %v479 = vadd.f32 %v400, %v478
  %v480 = vpop.f32.mrb[0].mxu0
  %v481 = vadd.f32 %v404, %v480
  %482 = vmatprep.mubr.f32.mxu0 0.0
  %483 = vmatmul.mubr.f32.gmra.mrb[0].mxu0 %v33
  %v484 = vpop.f32.mrb[0].mxu0
  %v485 = vadd.f32 %v400, %v484
  %v486 = vpop.f32.mrb[0].mxu0
  %v487 = vadd.f32 %v404, %v486
  %488 = vmatprep.mubr.f32.mxu0 0.0
  %489 = vmatmul.mubr.f32.gmra.mrb[0].mxu0 %v34
  %v490 = vpop.f32.mrb[0].mxu0
  %v491 = vadd.f32 %v400, %v490
  %v492 = vpop.f32.mrb[0].mxu0
  %v493 = vadd.f32 %v404, %v492
  %494 = vmatprep.mubr.f32.mxu0 0.0
  %495 = vmatmul.mubr.f32.gmra.mrb[0].mxu0 %v35
  %v496 = vpop.f32.mrb[0].mxu0
  %v497 = vadd.f32 %v400, %v496
  %v498 = vpop.f32.mrb[0].mxu0
  %v499 = vadd.f32 %v404, %v498
  %500 = vmatprep.mubr.f32.mxu0 0.0
  %501 = vmatmul.mubr.f32.gmra.mrb[0].mxu0 %v36
  %v502 = vpop.f32.mrb[0].mxu0
  %v503 = vadd.f32 %v400, %v502
  %v504 = vpop.f32.mrb[0].mxu0
  %v505 = vadd.f32 %v404, %v504
  %506 = vmatprep.mubr.f32.mxu0 0.0
  %507 = vmatmul.mubr.f32.gmra.mrb[0].mxu0 %v37
  %v508 = vpop.f32.mrb[0].mxu0
  %v509 = vadd.f32 %v400, %v508
  %v510 = vpop.f32.mrb[0].mxu0
  %v511 = vadd.f32 %v404, %v510
  %512 = vmatprep.mubr.f32.mxu0 0.0
  %513 = vmatmul.mubr.f32.gmra.mrb[0].mxu0 %v38
  %v514 = vpop.f32.mrb[0].mxu0
  %v515 = vadd.f32 %v400, %v514
  %v516 = vpop.f32.mrb[0].mxu0
  %v517 = vadd.f32 %v404, %v516
  %518 = vmatprep.mubr.f32.mxu0 0.0
  %519 = vmatmul.mubr.f32.gmra.mrb[0].mxu0 %v39
  %v520 = vpop.f32.mrb[0].mxu0
  %v521 = vadd.f32 %v400, %v520
  %v522 = vpop.f32.mrb[0].mxu0
  %v523 = vadd.f32 %v404, %v522
  %524 = vdwg.mxu0
  %525 = vmatprep.subr.mxu0 0.0
  %526 = vmatpush1.msra.mxu0 %v349
  %527 = vmatprep.subr.mxu0 0.0
  %528 = vmatpush1.msra.mxu0 %v352
  %529 = vmatprep.subr.mxu0 0.0
  %530 = vmatpush1.msra.mxu0 %v355
  %531 = vmatprep.subr.mxu0 0.0
  %532 = vmatpush1.msra.mxu0 %v358
  %533 = vmatprep.subr.mxu0 0.0
  %534 = vmatpush1.msra.mxu0 %v361
  %535 = vmatprep.subr.mxu0 0.0
  %536 = vmatpush1.msra.mxu0 %v364
  %537 = vmatprep.subr.mxu0 0.0
  %538 = vmatpush1.msra.mxu0 %v367
  %539 = vmatprep.subr.mxu0 0.0
  %540 = vmatpush1.msra.mxu0 %v370
  %541 = vmatprep.subr.mxu0 0.0
  %542 = vmatpush1.msra.mxu0 %v373
  %543 = vmatprep.subr.mxu0 0.0
  %544 = vmatpush1.msra.mxu0 %v376
  %545 = vmatprep.subr.mxu0 0.0
  %546 = vmatpush1.msra.mxu0 %v379
  %547 = vmatprep.subr.mxu0 0.0
  %548 = vmatpush1.msra.mxu0 %v382
  %549 = vmatprep.subr.mxu0 0.0
  %550 = vmatpush1.msra.mxu0 %v385
  %551 = vmatprep.subr.mxu0 0.0
  %552 = vmatpush1.msra.mxu0 %v388
  %553 = vmatprep.subr.mxu0 0.0
  %554 = vmatpush1.msra.mxu0 %v391
  %555 = vmatprep.subr.mxu0 0.0
  %556 = vmatpush1.msra.mxu0 %v394
  %557 = vmatprep.subr.mxu0 0.0
  %558 = vmatpush1.msra.mxu0 0.0
  %559 = vmatprep.subr.mxu0 0.0
  %560 = vmatpush1.msra.mxu0 0.0
  %561 = vmatprep.subr.mxu0 0.0
  %562 = vmatpush1.msra.mxu0 0.0
  %563 = vmatprep.subr.mxu0 0.0
  %564 = vmatpush1.msra.mxu0 0.0
  %565 = vmatprep.subr.mxu0 0.0
  %566 = vmatpush1.msra.mxu0 0.0
  %567 = vmatprep.subr.mxu0 0.0
  %568 = vmatpush1.msra.mxu0 0.0
  %569 = vmatprep.subr.mxu0 0.0
  %570 = vmatpush1.msra.mxu0 0.0
  %571 = vmatprep.subr.mxu0 0.0
  %572 = vmatpush1.msra.mxu0 0.0
  %573 = vmatprep.subr.mxu0 0.0
  %574 = vmatpush1.msra.mxu0 0.0
  %575 = vmatprep.subr.mxu0 0.0
  %576 = vmatpush1.msra.mxu0 0.0
  %577 = vmatprep.subr.mxu0 0.0
  %578 = vmatpush1.msra.mxu0 0.0
  %579 = vmatprep.subr.mxu0 0.0
  %580 = vmatpush1.msra.mxu0 0.0
  %581 = vmatprep.subr.mxu0 0.0
  %582 = vmatpush1.msra.mxu0 0.0
  %583 = vmatprep.subr.mxu0 0.0
  %584 = vmatpush1.msra.mxu0 0.0
  %585 = vmatprep.subr.mxu0 0.0
  %586 = vmatpush1.msra.mxu0 0.0
  %587 = vmatprep.subr.mxu0 0.0
  %588 = vmatpush1.msra.mxu0 0.0
  %589 = vmatprep.mubr.f32.mxu0 0.0
  %590 = vmatmul.mubr.f32.gmra.mrb[0].mxu0 %v32
  %v591 = vpop.f32.mrb[0].mxu0
  %v592 = vadd.f32 %v408, %v591
  %v593 = vpop.f32.mrb[0].mxu0
  %594 = vmatprep.mubr.f32.mxu0 0.0
  %595 = vmatmul.mubr.f32.gmra.mrb[0].mxu0 %v33
  %v596 = vpop.f32.mrb[0].mxu0
  %v597 = vadd.f32 %v408, %v596
  %v598 = vpop.f32.mrb[0].mxu0
  %599 = vmatprep.mubr.f32.mxu0 0.0
  %600 = vmatmul.mubr.f32.gmra.mrb[0].mxu0 %v34
  %v601 = vpop.f32.mrb[0].mxu0
  %v602 = vadd.f32 %v408, %v601
  %v603 = vpop.f32.mrb[0].mxu0
  %604 = vmatprep.mubr.f32.mxu0 0.0
  %605 = vmatmul.mubr.f32.gmra.mrb[0].mxu0 %v35
  %v606 = vpop.f32.mrb[0].mxu0
  %v607 = vadd.f32 %v408, %v606
  %v608 = vpop.f32.mrb[0].mxu0
  %609 = vmatprep.mubr.f32.mxu0 0.0
  %610 = vmatmul.mubr.f32.gmra.mrb[0].mxu0 %v36
  %v611 = vpop.f32.mrb[0].mxu0
  %v612 = vadd.f32 %v408, %v611
  %v613 = vpop.f32.mrb[0].mxu0
  %614 = vmatprep.mubr.f32.mxu0 0.0
  %615 = vmatmul.mubr.f32.gmra.mrb[0].mxu0 %v37
  %v616 = vpop.f32.mrb[0].mxu0
  %v617 = vadd.f32 %v408, %v616
  %v618 = vpop.f32.mrb[0].mxu0
  %619 = vmatprep.mubr.f32.mxu0 0.0
  %620 = vmatmul.mubr.f32.gmra.mrb[0].mxu0 %v38
  %v621 = vpop.f32.mrb[0].mxu0
  %v622 = vadd.f32 %v408, %v621
  %v623 = vpop.f32.mrb[0].mxu0
  %624 = vmatprep.mubr.f32.mxu0 0.0
  %625 = vmatmul.mubr.f32.gmra.mrb[0].mxu0 %v39
  %v626 = vpop.f32.mrb[0].mxu0
  %v627 = vadd.f32 %v408, %v626
  %v628 = vpop.f32.mrb[0].mxu0
  %629 = vdwg.mxu0
  %630 = vst [vmem:[#allocation3] sm:$0xff] %v479
  %631 = vst [vmem:[#allocation3 + $0x8] sm:$0xff] %v481
  %632 = vst [vmem:[#allocation3 + $0x10] sm:$0xff] %v592
  %633 = vst [vmem:[#allocation3 + $0x18] sm:$0xff] %v485
  %634 = vst [vmem:[#allocation3 + $0x20] sm:$0xff] %v487
  %635 = vst [vmem:[#allocation3 + $0x28] sm:$0xff] %v597
  %636 = vst [vmem:[#allocation3 + $0x30] sm:$0xff] %v491
  %637 = vst [vmem:[#allocation3 + $0x38] sm:$0xff] %v493
  %638 = vst [vmem:[#allocation3 + $0x40] sm:$0xff] %v602
  %639 = vst [vmem:[#allocation3 + $0x48] sm:$0xff] %v497
  %640 = vst [vmem:[#allocation3 + $0x50] sm:$0xff] %v499
  %641 = vst [vmem:[#allocation3 + $0x58] sm:$0xff] %v607
  %642 = vst [vmem:[#allocation3 + $0x60] sm:$0xff] %v503
  %643 = vst [vmem:[#allocation3 + $0x68] sm:$0xff] %v505
  %644 = vst [vmem:[#allocation3 + $0x70] sm:$0xff] %v612
  %645 = vst [vmem:[#allocation3 + $0x78] sm:$0xff] %v509
  %646 = vst [vmem:[#allocation3 + $0x80] sm:$0xff] %v511
  %647 = vst [vmem:[#allocation3 + $0x88] sm:$0xff] %v617
  %648 = vst [vmem:[#allocation3 + $0x90] sm:$0xff] %v515
  %649 = vst [vmem:[#allocation3 + $0x98] sm:$0xff] %v517
  %650 = vst [vmem:[#allocation3 + $0xa0] sm:$0xff] %v622
  %651 = vst [vmem:[#allocation3 + $0xa8] sm:$0xff] %v521
  %652 = vst [vmem:[#allocation3 + $0xb0] sm:$0xff] %v523
  %653 = vst [vmem:[#allocation3 + $0xb8] sm:$0xff] %v627
  %v654 = vld [vmem:[%s2] sm:$0xff]
  %v655 = vld [vmem:[%s2 + $0x8] sm:$0xff]
  %v656 = vld [vmem:[%s2 + $0x10] sm:$0xff]
  %v657 = vld [vmem:[%s2 + $0x18] sm:$0xff]
  %v658 = vld [vmem:[%s2 + $0x20] sm:$0xff]
  %v659 = vld [vmem:[%s2 + $0x28] sm:$0xff]
  %v660 = vld [vmem:[%s2 + $0x30] sm:$0xff]
  %v661 = vld [vmem:[%s2 + $0x38] sm:$0xff]
  %v662 = vld [vmem:[%s2 + $0x40] sm:$0xff]
  %v663 = vld [vmem:[%s2 + $0x48] sm:$0xff]
  %v664 = vld [vmem:[%s2 + $0x50] sm:$0xff]
  %v665 = vld [vmem:[%s2 + $0x58] sm:$0xff]
  %v666 = vld [vmem:[%s2 + $0x60] sm:$0xff]
  %v667 = vld [vmem:[%s2 + $0x68] sm:$0xff]
  %v668 = vld [vmem:[%s2 + $0x70] sm:$0xff]
  %v669 = vld [vmem:[%s2 + $0x78] sm:$0xff]
  %v670 = vld [vmem:[%s2 + $0x80] sm:$0xff]
  %v671 = vld [vmem:[%s2 + $0x88] sm:$0xff]
  %v672 = vld [vmem:[%s2 + $0x90] sm:$0xff]
  %v673 = vld [vmem:[%s2 + $0x98] sm:$0xff]
  %v674 = vld [vmem:[%s2 + $0xa0] sm:$0xff]
  %v675 = vld [vmem:[%s2 + $0xa8] sm:$0xff]
  %v676 = vld [vmem:[%s2 + $0xb0] sm:$0xff]
  %v677 = vld [vmem:[%s2 + $0xb8] sm:$0xff]
  %v678 = vld [vmem:[%s2 + $0xc0] sm:$0xff]
  %v679 = vld [vmem:[%s2 + $0xc8] sm:$0xff]
  %v680 = vld [vmem:[%s2 + $0xd0] sm:$0xff]
  %v681 = vld [vmem:[%s2 + $0xd8] sm:$0xff]
  %v682 = vld [vmem:[%s2 + $0xe0] sm:$0xff]
  %v683 = vld [vmem:[%s2 + $0xe8] sm:$0xff]
  %v684 = vld [vmem:[%s2 + $0xf0] sm:$0xff]
  %v685 = vld [vmem:[%s2 + $0xf8] sm:$0xff]
  %v686 = vld [vmem:[%s2 + $0x100] sm:$0xff]
  %v687 = vld [vmem:[%s2 + $0x108] sm:$0xff]
  %v688 = vld [vmem:[%s2 + $0x110] sm:$0xff]
  %v689 = vld [vmem:[%s2 + $0x118] sm:$0xff]
  %v690 = vld [vmem:[%s2 + $0x120] sm:$0xff]
  %v691 = vld [vmem:[%s2 + $0x128] sm:$0xff]
  %v692 = vld [vmem:[%s2 + $0x130] sm:$0xff]
  %v693 = vld [vmem:[%s2 + $0x138] sm:$0xff]
  %v694 = vld [vmem:[%s2 + $0x140] sm:$0xff]
  %v695 = vld [vmem:[%s2 + $0x148] sm:$0xff]
  %v696 = vld [vmem:[%s2 + $0x150] sm:$0xff]
  %v697 = vld [vmem:[%s2 + $0x158] sm:$0xff]
  %v698 = vld [vmem:[%s2 + $0x160] sm:$0xff]
  %v699 = vld [vmem:[%s2 + $0x168] sm:$0xff]
  %v700 = vld [vmem:[%s2 + $0x170] sm:$0xff]
  %v701 = vld [vmem:[%s2 + $0x178] sm:$0xff]
  %v702 = vld [vmem:[%s6] sm:$0xff]
  %v703 = vld [vmem:[%s6 + $0x8] sm:$0xff]
  %v704 = vld [vmem:[%s6 + $0x10] sm:$0xff]
  %v705 = vld [vmem:[%s6 + $0x18] sm:$0xff]
  %v706 = vld [vmem:[%s6 + $0x20] sm:$0xff]
  %v707 = vld [vmem:[%s6 + $0x28] sm:$0xff]
  %v708 = vld [vmem:[%s6 + $0x30] sm:$0xff]
  %v709 = vld [vmem:[%s6 + $0x38] sm:$0xff]
  %v710 = vld [vmem:[%s6 + $0x40] sm:$0xff]
  %v711 = vld [vmem:[%s6 + $0x48] sm:$0xff]
  %v712 = vld [vmem:[%s6 + $0x50] sm:$0xff]
  %v713 = vld [vmem:[%s6 + $0x58] sm:$0xff]
  %v714 = vld [vmem:[%s6 + $0x60] sm:$0xff]
  %v715 = vld [vmem:[%s6 + $0x68] sm:$0xff]
  %v716 = vld [vmem:[%s6 + $0x70] sm:$0xff]
  %v717 = vld [vmem:[%s6 + $0x78] sm:$0xff]
  %v718 = vld [vmem:[%s6 + $0x80] sm:$0xff]
  %v719 = vld [vmem:[%s6 + $0x88] sm:$0xff]
  %v720 = vld [vmem:[%s6 + $0x90] sm:$0xff]
  %v721 = vld [vmem:[%s6 + $0x98] sm:$0xff]
  %v722 = vld [vmem:[%s6 + $0xa0] sm:$0xff]
  %v723 = vld [vmem:[%s6 + $0xa8] sm:$0xff]
  %v724 = vld [vmem:[%s6 + $0xb0] sm:$0xff]
  %v725 = vld [vmem:[%s6 + $0xb8] sm:$0xff]
  %v726 = vld [vmem:[%s6 + $0xc0] sm:$0xff]
  %v727 = vld [vmem:[%s6 + $0xc8] sm:$0xff]
  %v728 = vld [vmem:[%s6 + $0xd0] sm:$0xff]
  %v729 = vld [vmem:[%s6 + $0xd8] sm:$0xff]
  %v730 = vld [vmem:[%s6 + $0xe0] sm:$0xff]
  %v731 = vld [vmem:[%s6 + $0xe8] sm:$0xff]
  %v732 = vld [vmem:[%s6 + $0xf0] sm:$0xff]
  %v733 = vld [vmem:[%s6 + $0xf8] sm:$0xff]
  %v734 = vld [vmem:[%s6 + $0x100] sm:$0xff]
  %v735 = vld [vmem:[%s6 + $0x108] sm:$0xff]
  %v736 = vld [vmem:[%s6 + $0x110] sm:$0xff]
  %v737 = vld [vmem:[%s6 + $0x118] sm:$0xff]
  %v738 = vld [vmem:[%s6 + $0x120] sm:$0xff]
  %v739 = vld [vmem:[%s6 + $0x128] sm:$0xff]
  %v740 = vld [vmem:[%s6 + $0x130] sm:$0xff]
  %v741 = vld [vmem:[%s6 + $0x138] sm:$0xff]
  %v742 = vld [vmem:[%s6 + $0x140] sm:$0xff]
  %v743 = vld [vmem:[%s6 + $0x148] sm:$0xff]
  %v744 = vld [vmem:[%s6 + $0x150] sm:$0xff]
  %v745 = vld [vmem:[%s6 + $0x158] sm:$0xff]
  %v746 = vld [vmem:[%s6 + $0x160] sm:$0xff]
  %v747 = vld [vmem:[%s6 + $0x168] sm:$0xff]
  %v748 = vld [vmem:[%s6 + $0x170] sm:$0xff]
  %v749 = vld [vmem:[%s6 + $0x178] sm:$0xff]
  %v750 = vld [vmem:[%s4] sm:$0x1]
  %v751 = vld [vmem:[%s8] sm:$0x1]
  loop: start=0, step=1, limit=8
  $region38: #{encoder_forward.1} parent=0 // loop_pre_header
    _
  $region39: #{encoder_forward.1} parent=0 // loop_header
    %s753 = sphi 0, %s757
    %p754 = scmp.ge.s32.totalorder %s753, 8
    %v758 = vphi 0.0, %v939
    %v759 = vphi 0.0, %v1116
  $region40: #{encoder_forward.1} parent=0 // loop_header_branch
    %756 = sbr.rel (%p754) target = $region44
  $region41: #{encoder_forward.1} parent=0 // loop_body
    %s760 = smul.u32 %s753, 8
    %s761 = ssub.s32 7, %s753
    %s762 = smul.u32 %s761, 8
    %s763 = sshra.s32 %s760, 3
    %s764 = sand.u32 %s760, 7
    %s765 = smul.u32 %s763, 3
    %s766 = smul.addr %s765, 8
    %s767 = scalar_lea.vmem [#allocation2], %s766
    %v768 = vld [vmem:[%s767] sm:$0xff]
    %v769 = vld [vmem:[%s767 + $0x8] sm:$0xff]
    %v770 = vld [vmem:[%s767 + $0x10] sm:$0xff]
    %771 = vmatprep.subr.mxu0 %v655
    %772 = vmatpush1.msra.mxu0 %v654
    %773 = vmatprep.subr.mxu0 %v658
    %774 = vmatpush1.msra.mxu0 %v657
    %775 = vmatprep.subr.mxu0 %v661
    %776 = vmatpush1.msra.mxu0 %v660
    %777 = vmatprep.subr.mxu0 %v664
    %778 = vmatpush1.msra.mxu0 %v663
    %779 = vmatprep.subr.mxu0 %v667
    %780 = vmatpush1.msra.mxu0 %v666
    %781 = vmatprep.subr.mxu0 %v670
    %782 = vmatpush1.msra.mxu0 %v669
    %783 = vmatprep.subr.mxu0 %v673
    %784 = vmatpush1.msra.mxu0 %v672
    %785 = vmatprep.subr.mxu0 %v676
    %786 = vmatpush1.msra.mxu0 %v675
    %787 = vmatprep.subr.mxu0 %v679
    %788 = vmatpush1.msra.mxu0 %v678
    %789 = vmatprep.subr.mxu0 %v682
    %790 = vmatpush1.msra.mxu0 %v681
    %791 = vmatprep.subr.mxu0 %v685
    %792 = vmatpush1.msra.mxu0 %v684
    %793 = vmatprep.subr.mxu0 %v688
    %794 = vmatpush1.msra.mxu0 %v687
    %795 = vmatprep.subr.mxu0 %v691
    %796 = vmatpush1.msra.mxu0 %v690
    %797 = vmatprep.subr.mxu0 %v694
    %798 = vmatpush1.msra.mxu0 %v693
    %799 = vmatprep.subr.mxu0 %v697
    %800 = vmatpush1.msra.mxu0 %v696
    %801 = vmatprep.subr.mxu0 %v700
    %802 = vmatpush1.msra.mxu0 %v699
    %803 = vmatprep.subr.mxu0 0.0
    %804 = vmatpush1.msra.mxu0 0.0
    %805 = vmatprep.subr.mxu0 0.0
    %806 = vmatpush1.msra.mxu0 0.0
    %807 = vmatprep.subr.mxu0 0.0
    %808 = vmatpush1.msra.mxu0 0.0
    %809 = vmatprep.subr.mxu0 0.0
    %810 = vmatpush1.msra.mxu0 0.0
    %811 = vmatprep.subr.mxu0 0.0
    %812 = vmatpush1.msra.mxu0 0.0
    %813 = vmatprep.subr.mxu0 0.0
    %814 = vmatpush1.msra.mxu0 0.0
    %815 = vmatprep.subr.mxu0 0.0
    %816 = vmatpush1.msra.mxu0 0.0
    %817 = vmatprep.subr.mxu0 0.0
    %818 = vmatpush1.msra.mxu0 0.0
    %819 = vmatprep.subr.mxu0 0.0
    %820 = vmatpush1.msra.mxu0 0.0
    %821 = vmatprep.subr.mxu0 0.0
    %822 = vmatpush1.msra.mxu0 0.0
    %823 = vmatprep.subr.mxu0 0.0
    %824 = vmatpush1.msra.mxu0 0.0
    %825 = vmatprep.subr.mxu0 0.0
    %826 = vmatpush1.msra.mxu0 0.0
    %827 = vmatprep.subr.mxu0 0.0
    %828 = vmatpush1.msra.mxu0 0.0
    %829 = vmatprep.subr.mxu0 0.0
    %830 = vmatpush1.msra.mxu0 0.0
    %831 = vmatprep.subr.mxu0 0.0
    %832 = vmatpush1.msra.mxu0 0.0
    %833 = vmatprep.subr.mxu0 0.0
    %834 = vmatpush1.msra.mxu0 0.0
    %835 = vmatprep.mubr.f32.mxu0 0.0
    %836 = vmatmul.mubr.f32.gmra.mrb[0].mxu0 %v758
    %v837 = vpop.f32.mrb[0].mxu0
    %v838 = vadd.f32 0.0, %v837
    %v839 = vpop.f32.mrb[0].mxu0
    %v840 = vadd.f32 0.0, %v839
    %841 = vdwg.mxu0
    %842 = vmatprep.subr.mxu0 0.0
    %843 = vmatpush1.msra.mxu0 %v656
    %844 = vmatprep.subr.mxu0 0.0
    %845 = vmatpush1.msra.mxu0 %v659
    %846 = vmatprep.subr.mxu0 0.0
    %847 = vmatpush1.msra.mxu0 %v662
    %848 = vmatprep.subr.mxu0 0.0
    %849 = vmatpush1.msra.mxu0 %v665
    %850 = vmatprep.subr.mxu0 0.0
    %851 = vmatpush1.msra.mxu0 %v668
    %852 = vmatprep.subr.mxu0 0.0
    %853 = vmatpush1.msra.mxu0 %v671
    %854 = vmatprep.subr.mxu0 0.0
    %855 = vmatpush1.msra.mxu0 %v674
    %856 = vmatprep.subr.mxu0 0.0
    %857 = vmatpush1.msra.mxu0 %v677
    %858 = vmatprep.subr.mxu0 0.0
    %859 = vmatpush1.msra.mxu0 %v680
    %860 = vmatprep.subr.mxu0 0.0
    %861 = vmatpush1.msra.mxu0 %v683
    %862 = vmatprep.subr.mxu0 0.0
    %863 = vmatpush1.msra.mxu0 %v686
    %864 = vmatprep.subr.mxu0 0.0
    %865 = vmatpush1.msra.mxu0 %v689
    %866 = vmatprep.subr.mxu0 0.0
    %867 = vmatpush1.msra.mxu0 %v692
    %868 = vmatprep.subr.mxu0 0.0
    %869 = vmatpush1.msra.mxu0 %v695
    %870 = vmatprep.subr.mxu0 0.0
    %871 = vmatpush1.msra.mxu0 %v698
    %872 = vmatprep.subr.mxu0 0.0
    %873 = vmatpush1.msra.mxu0 %v701
    %874 = vmatprep.subr.mxu0 0.0
    %875 = vmatpush1.msra.mxu0 0.0
    %876 = vmatprep.subr.mxu0 0.0
    %877 = vmatpush1.msra.mxu0 0.0
    %878 = vmatprep.subr.mxu0 0.0
    %879 = vmatpush1.msra.mxu0 0.0
    %880 = vmatprep.subr.mxu0 0.0
    %881 = vmatpush1.msra.mxu0 0.0
    %882 = vmatprep.subr.mxu0 0.0
    %883 = vmatpush1.msra.mxu0 0.0
    %884 = vmatprep.subr.mxu0 0.0
    %885 = vmatpush1.msra.mxu0 0.0
    %886 = vmatprep.subr.mxu0 0.0
    %887 = vmatpush1.msra.mxu0 0.0
    %888 = vmatprep.subr.mxu0 0.0
    %889 = vmatpush1.msra.mxu0 0.0
    %890 = vmatprep.subr.mxu0 0.0
    %891 = vmatpush1.msra.mxu0 0.0
    %892 = vmatprep.subr.mxu0 0.0
    %893 = vmatpush1.msra.mxu0 0.0
    %894 = vmatprep.subr.mxu0 0.0
    %895 = vmatpush1.msra.mxu0 0.0
    %896 = vmatprep.subr.mxu0 0.0
    %897 = vmatpush1.msra.mxu0 0.0
    %898 = vmatprep.subr.mxu0 0.0
    %899 = vmatpush1.msra.mxu0 0.0
    %900 = vmatprep.subr.mxu0 0.0
    %901 = vmatpush1.msra.mxu0 0.0
    %902 = vmatprep.subr.mxu0 0.0
    %903 = vmatpush1.msra.mxu0 0.0
    %904 = vmatprep.subr.mxu0 0.0
    %905 = vmatpush1.msra.mxu0 0.0
    %906 = vmatprep.mubr.f32.mxu0 0.0
    %907 = vmatmul.mubr.f32.gmra.mrb[0].mxu0 %v758
    %v908 = vpop.f32.mrb[0].mxu0
    %v909 = vadd.f32 0.0, %v908
    %v910 = vpop.f32.mrb[0].mxu0
    %911 = vdwg.mxu0
    %v912 = vadd.f32 %v768, %v838
    %v913 = vadd.f32 %v769, %v840
    %v914 = vxor.u32 %v912, 2147483648
    %v915 = vxor.u32 %v913, 2147483648
    %v916 = vmul.f32 %v914, 1.442695
    %v917 = vpow.pop %v916
    %v918 = vmul.f32 %v915, 1.442695
    %v919 = vpow.pop %v918
    %v920 = vadd.f32 %v917, 1.0
    %v921 = vadd.f32 %v919, 1.0
    %v922 = vrcp.pop %v920
    %v923 = vmul.f32 1.0, %v922
    %v924 = vrcp.pop %v921
    %v925 = vmul.f32 1.0, %v924
    %v927 = vlaneseq
    %v928 = vshrl.u32 %v927, 7
    %v929 = vsub.s32 0, %v928
    %v930 = vrot.slane %v750, %v929
    %v932 = vadd.f32 %v909, %v930
    %v933 = vmul.f32 %v923, %v932
    %v934 = vadd.f32 %v770, %v933
    %v935 = vtanh.pop %v934
    %v936 = vsub.f32 1.0, %v925
    %v937 = vmul.f32 %v936, %v935
    %v938 = vmul.f32 %v925, %v758
    %v939 = vadd.f32 %v937, %v938
    %s940 = sshra.s32 %s762, 3
    %s941 = sand.u32 %s762, 7
    %s942 = smul.u32 %s940, 3
    %s943 = smul.addr %s942, 8
    %s944 = scalar_lea.vmem [#allocation3], %s943
    %v945 = vld [vmem:[%s944] sm:$0xff]
    %v946 = vld [vmem:[%s944 + $0x8] sm:$0xff]
    %v947 = vld [vmem:[%s944 + $0x10] sm:$0xff]
    %948 = vmatprep.subr.mxu0 %v703
    %949 = vmatpush1.msra.mxu0 %v702
    %950 = vmatprep.subr.mxu0 %v706
    %951 = vmatpush1.msra.mxu0 %v705
    %952 = vmatprep.subr.mxu0 %v709
    %953 = vmatpush1.msra.mxu0 %v708
    %954 = vmatprep.subr.mxu0 %v712
    %955 = vmatpush1.msra.mxu0 %v711
    %956 = vmatprep.subr.mxu0 %v715
    %957 = vmatpush1.msra.mxu0 %v714
    %958 = vmatprep.subr.mxu0 %v718
    %959 = vmatpush1.msra.mxu0 %v717
    %960 = vmatprep.subr.mxu0 %v721
    %961 = vmatpush1.msra.mxu0 %v720
    %962 = vmatprep.subr.mxu0 %v724
    %963 = vmatpush1.msra.mxu0 %v723
    %964 = vmatprep.subr.mxu0 %v727
    %965 = vmatpush1.msra.mxu0 %v726
    %966 = vmatprep.subr.mxu0 %v730
    %967 = vmatpush1.msra.mxu0 %v729
    %968 = vmatprep.subr.mxu0 %v733
    %969 = vmatpush1.msra.mxu0 %v732
    %970 = vmatprep.subr.mxu0 %v736
    %971 = vmatpush1.msra.mxu0 %v735
    %972 = vmatprep.subr.mxu0 %v739
    %973 = vmatpush1.msra.mxu0 %v738
    %974 = vmatprep.subr.mxu0 %v742
    %975 = vmatpush1.msra.mxu0 %v741
    %976 = vmatprep.subr.mxu0 %v745
    %977 = vmatpush1.msra.mxu0 %v744
    %978 = vmatprep.subr.mxu0 %v748
    %979 = vmatpush1.msra.mxu0 %v747
    %980 = vmatprep.subr.mxu0 0.0
    %981 = vmatpush1.msra.mxu0 0.0
    %982 = vmatprep.subr.mxu0 0.0
    %983 = vmatpush1.msra.mxu0 0.0
    %984 = vmatprep.subr.mxu0 0.0
    %985 = vmatpush1.msra.mxu0 0.0
    %986 = vmatprep.subr.mxu0 0.0
    %987 = vmatpush1.msra.mxu0 0.0
    %988 = vmatprep.subr.mxu0 0.0
    %989 = vmatpush1.msra.mxu0 0.0
    %990 = vmatprep.subr.mxu0 0.0
    %991 = vmatpush1.msra.mxu0 0.0
    %992 = vmatprep.subr.mxu0 0.0
    %993 = vmatpush1.msra.mxu0 0.0
    %994 = vmatprep.subr.mxu0 0.0
    %995 = vmatpush1.msra.mxu0 0.0
    %996 = vmatprep.subr.mxu0 0.0
    %997 = vmatpush1.msra.mxu0 0.0
    %998 = vmatprep.subr.mxu0 0.0
    %999 = vmatpush1.msra.mxu0 0.0
    %1000 = vmatprep.subr.mxu0 0.0
    %1001 = vmatpush1.msra.mxu0 0.0
    %1002 = vmatprep.subr.mxu0 0.0
    %1003 = vmatpush1.msra.mxu0 0.0
    %1004 = vmatprep.subr.mxu0 0.0
    %1005 = vmatpush1.msra.mxu0 0.0
    %1006 = vmatprep.subr.mxu0 0.0
    %1007 = vmatpush1.msra.mxu0 0.0
    %1008 = vmatprep.subr.mxu0 0.0
    %1009 = vmatpush1.msra.mxu0 0.0
    %1010 = vmatprep.subr.mxu0 0.0
    %1011 = vmatpush1.msra.mxu0 0.0
    %1012 = vmatprep.mubr.f32.mxu0 0.0
    %1013 = vmatmul.mubr.f32.gmra.mrb[0].mxu0 %v759
    %v1014 = vpop.f32.mrb[0].mxu0
    %v1015 = vadd.f32 0.0, %v1014
    %v1016 = vpop.f32.mrb[0].mxu0
    %v1017 = vadd.f32 0.0, %v1016
    %1018 = vdwg.mxu0
    %1019 = vmatprep.subr.mxu0 0.0
    %1020 = vmatpush1.msra.mxu0 %v704
    %1021 = vmatprep.subr.mxu0 0.0
    %1022 = vmatpush1.msra.mxu0 %v707
    %1023 = vmatprep.subr.mxu0 0.0
    %1024 = vmatpush1.msra.mxu0 %v710
    %1025 = vmatprep.subr.mxu0 0.0
    %1026 = vmatpush1.msra.mxu0 %v713
    %1027 = vmatprep.subr.mxu0 0.0
    %1028 = vmatpush1.msra.mxu0 %v716
    %1029 = vmatprep.subr.mxu0 0.0
    %1030 = vmatpush1.msra.mxu0 %v719
    %1031 = vmatprep.subr.mxu0 0.0
    %1032 = vmatpush1.msra.mxu0 %v722
    %1033 = vmatprep.subr.mxu0 0.0
    %1034 = vmatpush1.msra.mxu0 %v725
    %1035 = vmatprep.subr.mxu0 0.0
    %1036 = vmatpush1.msra.mxu0 %v728
    %1037 = vmatprep.subr.mxu0 0.0
    %1038 = vmatpush1.msra.mxu0 %v731
    %1039 = vmatprep.subr.mxu0 0.0
    %1040 = vmatpush1.msra.mxu0 %v734
    %1041 = vmatprep.subr.mxu0 0.0
    %1042 = vmatpush1.msra.mxu0 %v737
    %1043 = vmatprep.subr.mxu0 0.0
    %1044 = vmatpush1.msra.mxu0 %v740
    %1045 = vmatprep.subr.mxu0 0.0
    %1046 = vmatpush1.msra.mxu0 %v743
    %1047 = vmatprep.subr.mxu0 0.0
    %1048 = vmatpush1.msra.mxu0 %v746
    %1049 = vmatprep.subr.mxu0 0.0
    %1050 = vmatpush1.msra.mxu0 %v749
    %1051 = vmatprep.subr.mxu0 0.0
    %1052 = vmatpush1.msra.mxu0 0.0
    %1053 = vmatprep.subr.mxu0 0.0
    %1054 = vmatpush1.msra.mxu0 0.0
    %1055 = vmatprep.subr.mxu0 0.0
    %1056 = vmatpush1.msra.mxu0 0.0
    %1057 = vmatprep.subr.mxu0 0.0
    %1058 = vmatpush1.msra.mxu0 0.0
    %1059 = vmatprep.subr.mxu0 0.0
    %1060 = vmatpush1.msra.mxu0 0.0
    %1061 = vmatprep.subr.mxu0 0.0
    %1062 = vmatpush1.msra.mxu0 0.0
    %1063 = vmatprep.subr.mxu0 0.0
    %1064 = vmatpush1.msra.mxu0 0.0
    %1065 = vmatprep.subr.mxu0 0.0
    %1066 = vmatpush1.msra.mxu0 0.0
    %1067 = vmatprep.subr.mxu0 0.0
    %1068 = vmatpush1.msra.mxu0 0.0
    %1069 = vmatprep.subr.mxu0 0.0
    %1070 = vmatpush1.msra.mxu0 0.0
    %1071 = vmatprep.subr.mxu0 0.0
    %1072 = vmatpush1.msra.mxu0 0.0
    %1073 = vmatprep.subr.mxu0 0.0
    %1074 = vmatpush1.msra.mxu0 0.0
    %1075 = vmatprep.subr.mxu0 0.0
    %1076 = vmatpush1.msra.mxu0 0.0
    %1077 = vmatprep.subr.mxu0 0.0
    %1078 = vmatpush1.msra.mxu0 0.0
    %1079 = vmatprep.subr.mxu0 0.0
    %1080 = vmatpush1.msra.mxu0 0.0
    %1081 = vmatprep.subr.mxu0 0.0
    %1082 = vmatpush1.msra.mxu0 0.0
    %1083 = vmatprep.mubr.f32.mxu0 0.0
    %1084 = vmatmul.mubr.f32.gmra.mrb[0].mxu0 %v759
    %v1085 = vpop.f32.mrb[0].mxu0
    %v1086 = vadd.f32 0.0, %v1085
    %v1087 = vpop.f32.mrb[0].mxu0
    %1088 = vdwg.mxu0
    %v1089 = vadd.f32 %v945, %v1015
    %v1090 = vadd.f32 %v946, %v1017
    %v1091 = vxor.u32 %v1089, 2147483648
    %v1092 = vxor.u32 %v1090, 2147483648
    %v1093 = vmul.f32 %v1091, 1.442695
    %v1094 = vpow.pop %v1093
    %v1095 = vmul.f32 %v1092, 1.442695
    %v1096 = vpow.pop %v1095
    %v1097 = vadd.f32 %v1094, 1.0
    %v1098 = vadd.f32 %v1096, 1.0
    %v1099 = vrcp.pop %v1097
    %v1100 = vmul.f32 1.0, %v1099
    %v1101 = vrcp.pop %v1098
    %v1102 = vmul.f32 1.0, %v1101
    %v1104 = vlaneseq
    %v1105 = vshrl.u32 %v1104, 7
    %v1106 = vsub.s32 0, %v1105
    %v1107 = vrot.slane %v751, %v1106
    %v1109 = vadd.f32 %v1086, %v1107
    %v1110 = vmul.f32 %v1100, %v1109
    %v1111 = vadd.f32 %v947, %v1110
    %v1112 = vtanh.pop %v1111
    %v1113 = vsub.f32 1.0, %v1102
    %v1114 = vmul.f32 %v1113, %v1112
    %v1115 = vmul.f32 %v1102, %v759
    %v1116 = vadd.f32 %v1114, %v1115
    %s1117 = smul.u32 %s763, 2
    %s1118 = smul.addr %s1117, 8
    %s1119 = scalar_lea.vmem %s9, %s1118
    %1120 = vst [vmem:[%s1119] sm:$0xff] %v939
    %s1121 = smul.u32 %s940, 2
    %s1122 = smul.addr %s1121, 8
    %s1123 = scalar_lea.vmem %s9, %s1122
    %1124 = vst [vmem:[%s1123 + $0x8] sm:$0xff] %v1116
  $region42: #{encoder_forward.1} parent=0 // loop_footer
    %s757 = sadd.s32 1, %s753
  $region43: #{encoder_forward.1} parent=0 // loop_footer_branch
    %752 = sbr.rel target = $region39
  $region44: #{encoder_forward.1} parent=0 // loop_exit
    _
  // Predicated region
  $region45: #{encoder_forward.1} parent=0 // pred_check
    _
  $region46: #{encoder_forward.1} parent=0 // pred_check_branch
    %1126 = sbr.rel (0) target = $region48
  $region47: #{encoder_forward.1} parent=0 // pred_region
    _
  $region48: #{encoder_forward.1} parent=0 // pred_fallthru
    _
  // Predicated region
  $region49: #{encoder_forward.1} parent=0 // pred_check
    _
  $region50: #{encoder_forward.1} parent=0 // pred_check_branch
    %1128 = sbr.rel (0) target = $region52
  $region51: #{encoder_forward.1} parent=0 // pred_region
    _
  $region52: #{encoder_forward.1} parent=0 // pred_fallthru
    _

</llo_original>
